<compile_context>
chip_gen: v5e
topology: v5e:2x2
jax: 0.10.0
libtpu: 0.0.40
codegen_flags: <defaults>
</compile_context>

<pallas_src>
import functools
import math

import jax
import jax.numpy as jnp
from jax.experimental import pallas as pl
from jax.experimental.pallas import tpu as pltpu

_LANE = 128


def _sublane(dtype) -> int:
    return {4: 8, 2: 16, 1: 32}.get(jnp.dtype(dtype).itemsize, 8)


def _round_up(x, m):
    return ((x + m - 1) // m) * m


def _vmem_budgets():
    """(scoped vmem limit, per-tile byte budget), sized per TPU generation."""
    try:
        cap = int(pltpu.get_tpu_info().vmem_capacity_bytes)
    except Exception:
        cap = 64 * 1024 * 1024                       # v7x-safe fallback
    limit = min((cap * 3) // 4, 96 * 1024 * 1024)    # 48 MiB v7x / 96 MiB v5e,v6e
    tile_budget = (limit * 4 // 5) // 4              # 4 live pipeline tiles + headroom
    return limit, tile_budget


def _hsig(y):
    return jnp.clip(y + 3.0, 0.0, 6.0) * (1.0 / 6.0)


# ---------------------------------------------------------------------------
# Fused single-pass kernel: each block holds full rows -> mean + scale in one go.
# ---------------------------------------------------------------------------
def _eca_fused_kernel(x_ref, o_ref, *, inv_len):
    x = x_ref[...]                                              # (TR, L)
    s = jnp.sum(x, axis=-1, dtype=jnp.float32, keepdims=True)   # (TR, 1) f32
    y = _hsig(s * inv_len)
    o_ref[...] = x * y.astype(x.dtype)


# ---------------------------------------------------------------------------
# Two-pass path for very long rows (a full-row tile does not fit VMEM).
# Pass 1: per-row mean -> h_sigmoid scale (L is the "arbitrary" reduction axis,
#         accumulator lives resident in the output block).
# ---------------------------------------------------------------------------
def _eca_scale_reduce_kernel(x_ref, y_ref, *, inv_len, l_total, tl):
    j = pl.program_id(1)

    @pl.when(j == 0)
    def _():
        y_ref[...] = jnp.zeros_like(y_ref)

    x = x_ref[...]                                              # (TR, TL)
    if l_total % tl != 0:                                       # mask OOB cols of edge block
        col = jax.lax.broadcasted_iota(jnp.int32, x.shape, 1) + j * tl
        x = jnp.where(col < l_total, x, jnp.zeros_like(x))
    y_ref[...] += jnp.sum(x, axis=-1, dtype=jnp.float32, keepdims=True)

    @pl.when(j == pl.num_programs(1) - 1)
    def _():
        y_ref[...] = _hsig(y_ref[...] * inv_len)


# Pass 2: out = x * y (broadcast over L).
def _eca_apply_kernel(x_ref, y_ref, o_ref):
    o_ref[...] = x_ref[...] * y_ref[...].astype(x_ref.dtype)


def eca_layer(x, *, l_tile=None):
    """ECALayer forward.  x: (..., L); mean is taken over the last dim.

    l_tile: optional override of the L tile length; forces the two-pass
    (long-L) path.  Mainly for testing that path at small shapes.
    """
    orig_shape = x.shape
    l = int(orig_shape[-1])
    r = int(math.prod(orig_shape[:-1])) if len(orig_shape) > 1 else 1
    x2 = x.reshape(r, l)                       # free: contiguous reshape
    dtype = x.dtype
    itemsize = jnp.dtype(dtype).itemsize
    sub = _sublane(dtype)

    vmem_limit, tile_budget = _vmem_budgets()
    row_tile_bytes = _round_up(l, _LANE) * itemsize   # VMEM footprint of one row

    use_fused = (l_tile is None) and (sub * row_tile_bytes <= tile_budget)

    if use_fused:
        # --- single-pass: whole rows per block, mean + scale fused ---
        if r <= sub:
            tr = r                                   # full-dim block is always legal
        else:
            tr_max = max(sub, (tile_budget // row_tile_bytes) // sub * sub)
            tr = min(tr_max, (r // sub) * sub)
            # keep >= 4 parallel blocks so v7x can shard over both TensorCores
            while pl.cdiv(r, tr) < 4 and tr > sub:
                tr = max(sub, _round_up((tr + 1) // 2, sub))

        out2 = pl.pallas_call(
            functools.partial(_eca_fused_kernel, inv_len=1.0 / float(l)),
            out_shape=jax.ShapeDtypeStruct((r, l), dtype),
            grid=(pl.cdiv(r, tr),),
            in_specs=[pl.BlockSpec((tr, l), lambda i: (i, 0))],
            out_specs=pl.BlockSpec((tr, l), lambda i: (i, 0)),
            compiler_params=pltpu.CompilerParams(
                dimension_semantics=("parallel",),
                vmem_limit_bytes=vmem_limit,
            ),
            cost_estimate=pl.CostEstimate(
                flops=2 * r * l,
                transcendentals=0,
                bytes_accessed=2 * r * l * itemsize,
            ),
        )(x2)
        return out2.reshape(orig_shape)

    # --- two-pass L-tiled path (rows too long for one VMEM tile) ---
    tr = sub if r >= sub else r
    if l_tile is not None:
        tl = min(_round_up(l_tile, _LANE), _round_up(l, _LANE))
    else:
        tl = max(_LANE, (tile_budget // (tr * itemsize)) // _LANE * _LANE)
        tl = min(tl, _round_up(l, _LANE))
    if tl >= l:
        tl = l                                        # block covers full rows

    grid = (pl.cdiv(r, tr), pl.cdiv(l, tl))

    y = pl.pallas_call(
        functools.partial(_eca_scale_reduce_kernel,
                          inv_len=1.0 / float(l), l_total=l, tl=tl),
        out_shape=jax.ShapeDtypeStruct((r, 1), jnp.float32),
        grid=grid,
        in_specs=[pl.BlockSpec((tr, tl), lambda i, j: (i, j))],
        out_specs=pl.BlockSpec((tr, 1), lambda i, j: (i, 0)),
        compiler_params=pltpu.CompilerParams(
            dimension_semantics=("parallel", "arbitrary"),
            vmem_limit_bytes=vmem_limit,
        ),
        cost_estimate=pl.CostEstimate(
            flops=r * l, transcendentals=0,
            bytes_accessed=r * l * itemsize + r * 4,
        ),
    )(x2)

    out2 = pl.pallas_call(
        _eca_apply_kernel,
        out_shape=jax.ShapeDtypeStruct((r, l), dtype),
        grid=grid,
        in_specs=[pl.BlockSpec((tr, tl), lambda i, j: (i, j)),
                  pl.BlockSpec((tr, 1), lambda i, j: (i, 0))],
        out_specs=pl.BlockSpec((tr, tl), lambda i, j: (i, j)),
        compiler_params=pltpu.CompilerParams(
            dimension_semantics=("parallel", "parallel"),
            vmem_limit_bytes=vmem_limit,
        ),
        cost_estimate=pl.CostEstimate(
            flops=r * l, transcendentals=0,
            bytes_accessed=2 * r * l * itemsize + r * 4,
        ),
    )(x2, y)
    return out2.reshape(orig_shape)


def make_eca_params(channel, gamma=2, b=1, seed=0):
    """Deterministic init of the Conv1d weight built in the PyTorch __init__.
    It is never used in forward(); kept only for structural parity."""
    t = int(abs((math.log(channel, 2) + b) / gamma))
    k = t if t % 2 else t + 1
    key = jax.random.PRNGKey(seed)
    bound = 1.0 / math.sqrt(1 * k)
    conv_w = jax.random.uniform(key, (1, 1, k), jnp.float32, -bound, bound)
    return {"conv_w": conv_w, "k": k}


def eca_reference(x):
    """Pure-JAX reference for correctness check."""
    y = jnp.mean(x, axis=-1, keepdims=True)
    y = jnp.clip(y + 3.0, 0.0, 6.0) / 6.0
    return x * y


if __name__ == "__main__":
    key = jax.random.PRNGKey(0)
    k1, k2 = jax.random.split(key)

    # Main case (fused single-pass path): (N, C, L) = (2, 4, 16).
    x = jax.random.normal(k1, (2, 4, 16), dtype=jnp.float32)
    params = make_eca_params(4)   # Conv1d weight exists in __init__ but is unused in forward
    out = jax.block_until_ready(eca_layer(x))
    ref = eca_reference(x)
    assert out.shape == x.shape and out.dtype == x.dtype
    assert jnp.allclose(out, ref, atol=1e-5, rtol=1e-5)

    # Exercise the long-L two-pass path (forced small L tile -> multi-step
    # reduction + edge-column masking) at a small shape.
    x_long = jax.random.normal(k2, (2, 3, 400), dtype=jnp.float32)
    out_long = jax.block_until_ready(eca_layer(x_long, l_tile=128))
    ref_long = eca_reference(x_long)
    assert out_long.shape == x_long.shape and out_long.dtype == x_long.dtype
    assert jnp.allclose(out_long, ref_long, atol=1e-5, rtol=1e-5)

    print("KERNEL_OK")
</pallas_src>

<mosaic_0001>
module attributes {stable_mosaic.version = 11 : i64} {
  func.func @_eca_fused_kernel(%arg0: i32, %arg1: memref<8x16xf32, #tpu.memory_space<vmem>>, %arg2: memref<8x16xf32, #tpu.memory_space<vmem>>) attributes {dimension_semantics = [#tpu.dimension_semantics<parallel>], iteration_bounds = array<i64: 1>, scalar_prefetch = 0 : i64, scratch_operands = 0 : i64, tpu.core_type = #tpu.core_type<tc>, window_params = [{transform_indices = @transform_0, window_bounds = array<i64: 8, 16>}, {transform_indices = @transform_1, window_bounds = array<i64: 8, 16>}]} {
    %c0 = arith.constant 0 : index
    %c0_0 = arith.constant 0 : index
    %0 = vector.load %arg1[%c0, %c0_0] : memref<8x16xf32, #tpu.memory_space<vmem>>, vector<8x16xf32>
    %cst = arith.constant dense<0.000000e+00> : vector<8xf32>
    %1 = vector.multi_reduction <add>, %0, %cst [1] : vector<8x16xf32> to vector<8xf32>
    %2 = vector.shape_cast %1 : vector<8xf32> to vector<8x1xf32>
    %cst_1 = arith.constant 6.250000e-02 : f32
    %3 = vector.broadcast %cst_1 : f32 to vector<8x1xf32>
    %4 = arith.mulf %2, %3 : vector<8x1xf32>
    %cst_2 = arith.constant 3.000000e+00 : f32
    %5 = vector.broadcast %cst_2 : f32 to vector<8x1xf32>
    %6 = arith.addf %4, %5 : vector<8x1xf32>
    %cst_3 = arith.constant 0.000000e+00 : f32
    %cst_4 = arith.constant 6.000000e+00 : f32
    %7 = vector.broadcast %cst_3 : f32 to vector<8x1xf32>
    %8 = arith.maximumf %7, %6 : vector<8x1xf32>
    %9 = vector.broadcast %cst_4 : f32 to vector<8x1xf32>
    %10 = arith.minimumf %9, %8 : vector<8x1xf32>
    %cst_5 = arith.constant 0.166666672 : f32
    %11 = vector.broadcast %cst_5 : f32 to vector<8x1xf32>
    %12 = arith.mulf %10, %11 : vector<8x1xf32>
    %13 = vector.broadcast %12 : vector<8x1xf32> to vector<8x16xf32>
    %14 = arith.mulf %0, %13 : vector<8x16xf32>
    %c0_6 = arith.constant 0 : index
    %c0_7 = arith.constant 0 : index
    %15 = vector.load %arg2[%c0_6, %c0_7] : memref<8x16xf32, #tpu.memory_space<vmem>>, vector<8x16xf32>
    tpu.vector_store %arg2[%c0_6, %c0_7], %14 {strides = array<i32>} : memref<8x16xf32, #tpu.memory_space<vmem>>, vector<8x16xf32>,
    return
  }
  func.func @transform_0(%arg0: i32) -> (i32, i32) {
    %c0_i32 = arith.constant 0 : i32
    %c0_i32_0 = arith.constant 0 : i32
    return %arg0, %c0_i32 : i32, i32
  }
  func.func @transform_1(%arg0: i32) -> (i32, i32) {
    %c0_i32 = arith.constant 0 : i32
    %c0_i32_0 = arith.constant 0 : i32
    return %arg0, %c0_i32 : i32, i32
  }
}

</mosaic_0001>

<llo_original>
// kernel: tpu_custom_call.1
$region0: #{tpu_custom_call.1}
  #allocation0 [shape = 'u32[]', space=smem, size = 0x4, offset = 0x4, fixed_abs, tag = 'smem constant byte address 0x4 - core index']
  #allocation1 [shape = 'u32[72,128]{1,0:T(1,128)}', space=vmem, size = 0x9000, scoped, tag = 'internal scratch']
  %s0 = inlined_call_operand.hbm [shape: f32[8,16], index: 0, kind: input, shape index: {}]
  %s1 = inlined_call_operand.hbm [shape: f32[8,16], index: 1, kind: output, shape index: {}]
  %s2 = sld [smem:[#allocation0]]
  $region18: #{tpu_custom_call.1} parent=0
    _
  %s4 = ssub.s32 1, %s2
  %s5 = scalar_select 0, %s4, %s2
  $region1: #{tpu_custom_call.1} parent=0
    #allocation2 [shape = 'u8[4096]{0}', space=vmem, size = 0x1000, scoped, tag = 'input window, operand 0, single buffered']
    #allocation3 [shape = 's32[1]{0}', space=sflag, size = 0x4, scoped, tag = 'scoped memory for tpu_custom_call.1']
    #allocation4 [shape = 's32[1]{0}', space=sflag, size = 0x4, scoped, tag = 'scoped memory for tpu_custom_call.1']
    #allocation5 [shape = 'u8[4096]{0}', space=vmem, size = 0x1000, scoped, tag = 'output window, operand 0, single buffered']
    %6 = vsyncpa [#allocation3], 0
    %7 = vsyncpa [#allocation4], 0
    // Predicated region
    $region2: #{tpu_custom_call.1} parent=1 // pred_check
      _
    $region3: #{tpu_custom_call.1} parent=1 // pred_check_branch
      %9 = sbr.rel (0) target = $region5
    $region4: #{tpu_custom_call.1} parent=1 // pred_region
      %11 = vsyncadd [#allocation3], 0
      %s13 = sshll.u32 %s0, 4
      %s14 = int_to_ptr.hbm [resolvable:$true] %s13
      %s15 = sshll.u32 [#allocation2], 4
      %s16 = int_to_ptr.vmem [resolvable:$true] %s15
      %18 = dma.hbm_to_vmem [thread:$0]  %s14, 128, %s16, [#allocation3]
    $region5: #{tpu_custom_call.1} parent=1 // pred_fallthru
      _
    // Predicated region
    $region6: #{tpu_custom_call.1} parent=1 // pred_check
      _
    $region7: #{tpu_custom_call.1} parent=1 // pred_check_branch
      %20 = sbr.rel (0) target = $region9
    $region8: #{tpu_custom_call.1} parent=1 // pred_region
      %22 = dma.done [#allocation3], 128
    $region9: #{tpu_custom_call.1} parent=1 // pred_fallthru
      _
    %v23 = vld [vmem:[#allocation2] sm:$0xff]
    %vm24 = vcmask 130048
    %v25 = vsel %vm24, %v23, 0.0
    %26 = vadd.xlane.f32.xlu0 %v25
    %v27 = vpop.xlane.xlu0 %26
    %v28 = vmul.f32 %v27, 0.0625
    %v29 = vadd.f32 %v28, 3.0
    %v30 = vmax.f32 %v29, 0.0
    %v31 = vmin.f32 %v30, 6.0
    %v32 = vmul.f32 %v31, 0.16666667
    %v33 = vmul.f32 %v23, %v32
    %34 = vst.msk [vmem:[#allocation5] sm:$0xff] %vm24, %v33
    // Predicated region
    $region10: #{tpu_custom_call.1} parent=1 // pred_check
      _
    $region11: #{tpu_custom_call.1} parent=1 // pred_check_branch
      %36 = sbr.rel (0) target = $region13
    $region12: #{tpu_custom_call.1} parent=1 // pred_region
      %38 = vsyncadd [#allocation4], 0
      %s40 = sshll.u32 [#allocation5], 4
      %s41 = int_to_ptr.vmem [resolvable:$true] %s40
      %s42 = sshll.u32 %s1, 4
      %s43 = int_to_ptr.hbm [resolvable:$true] %s42
      %45 = dma.vmem_to_hbm [thread:$0]  %s41, 128, %s43, [#allocation4]
    $region13: #{tpu_custom_call.1} parent=1 // pred_fallthru
      _
    // Predicated region
    $region14: #{tpu_custom_call.1} parent=1 // pred_check
      _
    $region15: #{tpu_custom_call.1} parent=1 // pred_check_branch
      %47 = sbr.rel (0) target = $region17
    $region16: #{tpu_custom_call.1} parent=1 // pred_region
      %49 = dma.done [#allocation4], 128
    $region17: #{tpu_custom_call.1} parent=1 // pred_fallthru
      _
    %50 = vsyncpa [#allocation3], 1
    %51 = vsyncpa [#allocation4], 1

</llo_original>
